<compile_context>
chip_gen: v7x
topology: tpu7x:2x2x1
jax: 0.10.0
libtpu: 0.0.40
codegen_flags: <defaults>
</compile_context>

<pallas_src>
import jax
import jax.numpy as jnp
from jax.experimental import pallas as pl
from jax.experimental.pallas import tpu as pltpu

_VMEM_LIMIT_BYTES = 32 * 1024 * 1024   # explicit & v7x-safe (64 MiB physical per TC)
_TILE_BUDGET_BYTES = 2 * 1024 * 1024   # per input block; x2 double-buffering stays tiny


def _pick_spatial_tile(S, C, itemsize, budget=_TILE_BUDGET_BYTES):
    """Largest spatial tile that is a multiple of 128 dividing S (or S itself) under budget."""
    if S * C * itemsize <= budget:
        return S
    t = (budget // (C * itemsize)) // 128 * 128
    t = min(t, (S // 128) * 128)
    while t >= 128:
        if S % t == 0:
            return t
        t -= 128
    # TODO(synk): add a masked ragged-tail path; for now fall back to a full-S block.
    return S


# ---------------------------------------------------------------------------
# Pallas kernel 1: global avg+max pooling over the spatial axis (CA "squeeze")
# ---------------------------------------------------------------------------
def _pool_kernel(x_ref, sum_ref, max_ref, sum_acc, max_acc):
    # x_ref:   (1, C, tS)  one spatial tile, channels on sublanes, spatial on lanes
    # sum_ref: (1, 1, C, 1) partial sum output for this (batch, chunk)
    # max_ref: (1, 1, C, 1) partial max output for this (batch, chunk)
    s = pl.program_id(2)

    @pl.when(s == 0)
    def _init():
        sum_acc[...] = jnp.zeros_like(sum_acc)
        max_acc[...] = jnp.full_like(max_acc, -jnp.inf)   # running max starts at -inf

    x = x_ref[0].astype(jnp.float32)                       # (C, tS), f32 accumulation
    sum_acc[...] += jnp.sum(x, axis=1, keepdims=True)      # (C, 1) cross-lane reduce
    max_acc[...] = jnp.maximum(max_acc[...], jnp.max(x, axis=1, keepdims=True))

    @pl.when(s == pl.num_programs(2) - 1)
    def _finalize():
        sum_ref[0, 0] = sum_acc[...]
        max_ref[0, 0] = max_acc[...]


def _global_avg_max_pool(x_ncs, spatial_tile=None):
    """x_ncs: (N, C, S) any float dtype -> (sum (N, C) f32, max (N, C) f32)."""
    N, C, S = x_ncs.shape
    tS = spatial_tile if spatial_tile is not None else _pick_spatial_tile(
        S, C, x_ncs.dtype.itemsize)
    assert S % tS == 0 and (tS == S or tS % 128 == 0), (S, tS)
    n_tiles = S // tS
    # Split spatial tiles into 2 "parallel" chunks so both v7x TensorCores get work
    # even for tiny batches (harmless on single-TC v5e/v6e).
    n_chunks = 2 if (n_tiles >= 2 and n_tiles % 2 == 0) else 1
    tiles_per_chunk = n_tiles // n_chunks

    sums, maxs = pl.pallas_call(
        _pool_kernel,
        out_shape=(
            jax.ShapeDtypeStruct((N, n_chunks, C, 1), jnp.float32),
            jax.ShapeDtypeStruct((N, n_chunks, C, 1), jnp.float32),
        ),
        grid_spec=pltpu.PrefetchScalarGridSpec(
            num_scalar_prefetch=0,
            grid=(N, n_chunks, tiles_per_chunk),
            in_specs=[
                pl.BlockSpec((1, C, tS),
                             lambda n, c, s: (n, 0, c * tiles_per_chunk + s)),
            ],
            out_specs=[
                pl.BlockSpec((1, 1, C, 1), lambda n, c, s: (n, c, 0, 0)),
                pl.BlockSpec((1, 1, C, 1), lambda n, c, s: (n, c, 0, 0)),
            ],
            scratch_shapes=[
                pltpu.VMEM((C, 1), jnp.float32),   # running sum
                pltpu.VMEM((C, 1), jnp.float32),   # running max
            ],
        ),
        compiler_params=pltpu.CompilerParams(
            dimension_semantics=("parallel", "parallel", "arbitrary"),
            vmem_limit_bytes=_VMEM_LIMIT_BYTES,
        ),
    )(x_ncs)

    total_sum = jnp.sum(sums[..., 0], axis=1)   # combine per-chunk partials -> (N, C)
    total_max = jnp.max(maxs[..., 0], axis=1)   # (N, C)
    return total_sum, total_max


def channel_attention(x, w_fc1, w_fc2, spatial_tile=None):
    """ChannelAttention forward. x: (N, C, D, H, W); w_fc1: (C//r, C); w_fc2: (C, C//r).
    Returns (N, C, 1, 1, 1) f32 attention weights."""
    N, C, D, H, W = x.shape
    S = D * H * W
    # No transpose, no dtype up-cast: (N,C,D,H,W) -> (N,C,S) is a free reshape; the kernel
    # reduces over the lane-major spatial axis and accumulates in f32 scratch.
    x_ncs = x.reshape(N, C, S)
    total_sum, total_max = _global_avg_max_pool(x_ncs, spatial_tile)
    avg = total_sum * (1.0 / S)                       # use TOTAL S, not the tile size

    # Shared MLP (1x1x1 convs == channel matmuls): tiny, runs once per forward in JAX,
    # keeping the per-tile kernel body free of MXU-hostile (2, C) matmuls.
    w1 = w_fc1.astype(jnp.float32)
    w2 = w_fc2.astype(jnp.float32)
    mlp = lambda p: jnp.maximum(p @ w1.T, 0.0) @ w2.T
    att = jax.nn.sigmoid(mlp(avg) + mlp(total_max))   # (N, C)
    return att.reshape(N, C, 1, 1, 1)


# ---------------------------------------------------------------------------
# Pallas kernel 2: fused residual scale  out = x * att + x = x * (att + 1)
# ---------------------------------------------------------------------------
def _fuse_kernel(x_ref, a_ref, o_ref):
    x = x_ref[...].astype(jnp.float32)        # (1, C, tS), spatial lane-dense
    a = a_ref[...].astype(jnp.float32)        # (1, C, 1) broadcast over lanes
    o_ref[...] = (x * (a + 1.0)).astype(o_ref.dtype)


def apply_channel_attention(x, att):
    """x: (N, C, D, H, W); att: (N, C, 1, 1, 1). Returns x * att + x."""
    N, C, D, H, W = x.shape
    S = D * H * W
    x_ncs = x.reshape(N, C, S)
    a_nc1 = att.reshape(N, C, 1).astype(jnp.float32)
    tS = _pick_spatial_tile(S, C, x_ncs.dtype.itemsize)
    assert S % tS == 0 and (tS == S or tS % 128 == 0), (S, tS)

    out = pl.pallas_call(
        _fuse_kernel,
        out_shape=jax.ShapeDtypeStruct((N, C, S), x.dtype),
        grid_spec=pltpu.PrefetchScalarGridSpec(
            num_scalar_prefetch=0,
            grid=(N, S // tS),
            in_specs=[
                pl.BlockSpec((1, C, tS), lambda n, s: (n, 0, s)),
                pl.BlockSpec((1, C, 1), lambda n, s: (n, 0, 0)),
            ],
            out_specs=pl.BlockSpec((1, C, tS), lambda n, s: (n, 0, s)),
        ),
        compiler_params=pltpu.CompilerParams(
            dimension_semantics=("parallel", "parallel"),
            vmem_limit_bytes=_VMEM_LIMIT_BYTES,
        ),
    )(x_ncs, a_nc1)
    return out.reshape(N, C, D, H, W)


# ---------------------------------------------------------------------------
# Conv3d + BatchNorm3d (inference mode) + ReLU stem — plain JAX glue
# ---------------------------------------------------------------------------
def conv_bn_relu(x, w, gamma, beta, mean, var, dilation=1, eps=1e-5):
    # TODO(synk): the 3x3x3 dilated Conv3d + BatchNorm3d stem stays in XLA
    # (lax.conv_general_dilated); only the ChannelAttention pooling and the x*att+x
    # fusion are hand-written Pallas kernels.
    y = jax.lax.conv_general_dilated(
        x, w,
        window_strides=(1, 1, 1),
        padding=[(dilation, dilation)] * 3,
        rhs_dilation=(dilation, dilation, dilation),
        dimension_numbers=("NCDHW", "OIDHW", "NCDHW"),
    )
    inv_std = 1.0 / jnp.sqrt(var + eps)
    scale = (gamma * inv_std).reshape(1, -1, 1, 1, 1)
    shift = (beta - mean * gamma * inv_std).reshape(1, -1, 1, 1, 1)
    return jnp.maximum(y * scale + shift, 0.0)


def double_conv(x, w_conv1, bn1, w_conv2, bn2, w_fc1, w_fc2, dilation=1):
    """DoubleConv forward: conv-bn-relu x2, then x * ChannelAttention(x) + x."""
    y = conv_bn_relu(x, w_conv1, *bn1, dilation=dilation)
    y = conv_bn_relu(y, w_conv2, *bn2, dilation=dilation)
    att = channel_attention(y, w_fc1, w_fc2)         # (N, C, 1, 1, 1) — Pallas pooling
    return apply_channel_attention(y, att)           # Pallas fused x*att + x


# ---------------------------------------------------------------------------
# Pure-JAX references
# ---------------------------------------------------------------------------
def channel_attention_ref(x, w_fc1, w_fc2):
    avg = x.mean(axis=(2, 3, 4))
    mx = x.max(axis=(2, 3, 4))
    mlp = lambda p: jnp.maximum(p @ w_fc1.T, 0.0) @ w_fc2.T
    att = jax.nn.sigmoid(mlp(avg) + mlp(mx))
    return att.reshape(x.shape[0], x.shape[1], 1, 1, 1)


def double_conv_ref(x, w_conv1, bn1, w_conv2, bn2, w_fc1, w_fc2, dilation=1):
    y = conv_bn_relu(x, w_conv1, *bn1, dilation=dilation)
    y = conv_bn_relu(y, w_conv2, *bn2, dilation=dilation)
    att = channel_attention_ref(y, w_fc1, w_fc2)
    return y * att + y


if __name__ == "__main__":
    # DoubleConv(in_channels=4, out_channels=32), ChannelAttention ratio=16 -> hidden=2.
    N, Cin, Cout = 2, 4, 32
    D = H = W = 8
    ratio = 16
    dilation = 1
    Hd = Cout // ratio

    key = jax.random.PRNGKey(0)
    ks = jax.random.split(key, 13)
    x = jax.random.normal(ks[0], (N, Cin, D, H, W), dtype=jnp.float32)
    w_conv1 = jax.random.normal(ks[1], (Cout, Cin, 3, 3, 3), jnp.float32) * (1.0 / jnp.sqrt(Cin * 27))
    w_conv2 = jax.random.normal(ks[2], (Cout, Cout, 3, 3, 3), jnp.float32) * (1.0 / jnp.sqrt(Cout * 27))
    # BatchNorm3d parameters + running statistics (inference mode, as in module.eval()).
    bn1 = (jax.random.uniform(ks[3], (Cout,), minval=0.5, maxval=1.5),
           jax.random.normal(ks[4], (Cout,)) * 0.1,
           jax.random.normal(ks[5], (Cout,)) * 0.1,
           jax.random.uniform(ks[6], (Cout,), minval=0.5, maxval=1.5))
    bn2 = (jax.random.uniform(ks[7], (Cout,), minval=0.5, maxval=1.5),
           jax.random.normal(ks[8], (Cout,)) * 0.1,
           jax.random.normal(ks[9], (Cout,)) * 0.1,
           jax.random.uniform(ks[10], (Cout,), minval=0.5, maxval=1.5))
    w_fc1 = jax.random.normal(ks[11], (Hd, Cout), jnp.float32) * (1.0 / jnp.sqrt(Cout))
    w_fc2 = jax.random.normal(ks[12], (Cout, Hd), jnp.float32) * (1.0 / jnp.sqrt(Hd))

    # Full DoubleConv forward (Pallas pooling + Pallas fuse, conv/BN in XLA).
    out = double_conv(x, w_conv1, bn1, w_conv2, bn2, w_fc1, w_fc2, dilation)
    out = jax.block_until_ready(out)
    ref = double_conv_ref(x, w_conv1, bn1, w_conv2, bn2, w_fc1, w_fc2, dilation)
    assert out.shape == (N, Cout, D, H, W), out.shape
    assert jnp.allclose(out, ref, atol=1e-4, rtol=1e-4), float(jnp.max(jnp.abs(out - ref)))

    # Also exercise the spatial-tiled + 2-chunk accumulation path of the pooling kernel.
    y = conv_bn_relu(x, w_conv1, *bn1, dilation=dilation)
    y = conv_bn_relu(y, w_conv2, *bn2, dilation=dilation)
    att_tiled = jax.block_until_ready(channel_attention(y, w_fc1, w_fc2, spatial_tile=128))
    att_ref = channel_attention_ref(y, w_fc1, w_fc2)
    assert jnp.allclose(att_tiled, att_ref, atol=1e-5, rtol=1e-5), \
        float(jnp.max(jnp.abs(att_tiled - att_ref)))

    print("KERNEL_OK")
</pallas_src>

<mosaic_0001>
module attributes {stable_mosaic.version = 11 : i64} {
  func.func @_pool_kernel(%arg0: i32, %arg1: i32, %arg2: i32, %arg3: memref<1x32x512xf32, #tpu.memory_space<vmem>>, %arg4: memref<1x1x32x1xf32, #tpu.memory_space<vmem>>, %arg5: memref<1x1x32x1xf32, #tpu.memory_space<vmem>>, %arg6: memref<32x1xf32, #tpu.memory_space<vmem>>, %arg7: memref<32x1xf32, #tpu.memory_space<vmem>>) attributes {dimension_semantics = [#tpu.dimension_semantics<parallel>, #tpu.dimension_semantics<parallel>, #tpu.dimension_semantics<arbitrary>], iteration_bounds = array<i64: 2, 1, 1>, scalar_prefetch = 0 : i64, scratch_operands = 2 : i64, tpu.core_type = #tpu.core_type<tc>, window_params = [{transform_indices = @transform_0, window_bounds = array<i64: 1, 32, 512>}, {transform_indices = @transform_1, window_bounds = array<i64: 1, 1, 32, 1>}, {transform_indices = @transform_2, window_bounds = array<i64: 1, 1, 32, 1>}]} {
    %c0_i32 = arith.constant 0 : i32
    %0 = arith.cmpi eq, %arg2, %c0_i32 : i32
    %1 = arith.extui %0 : i1 to i32
    %c0_i32_0 = arith.constant 0 : i32
    %2 = arith.cmpi ne, %1, %c0_i32_0 : i32
    scf.if %2 {
      %cst_14 = arith.constant 0.000000e+00 : f32
      %18 = vector.broadcast %cst_14 : f32 to vector<32x1xf32>
      %c0_15 = arith.constant 0 : index
      %c0_16 = arith.constant 0 : index
      %19 = vector.load %arg6[%c0_15, %c0_16] : memref<32x1xf32, #tpu.memory_space<vmem>>, vector<32x1xf32>
      tpu.vector_store %arg6[%c0_15, %c0_16], %18 {strides = array<i32>} : memref<32x1xf32, #tpu.memory_space<vmem>>, vector<32x1xf32>,
      %cst_17 = arith.constant 0xFF800000 : f32
      %20 = vector.broadcast %cst_17 : f32 to vector<32x1xf32>
      %c0_18 = arith.constant 0 : index
      %c0_19 = arith.constant 0 : index
      %21 = vector.load %arg7[%c0_18, %c0_19] : memref<32x1xf32, #tpu.memory_space<vmem>>, vector<32x1xf32>
      tpu.vector_store %arg7[%c0_18, %c0_19], %20 {strides = array<i32>} : memref<32x1xf32, #tpu.memory_space<vmem>>, vector<32x1xf32>,
    } else {
    }
    %c0 = arith.constant 0 : index
    %c0_1 = arith.constant 0 : index
    %c0_2 = arith.constant 0 : index
    %3 = vector.load %arg3[%c0, %c0_1, %c0_2] : memref<1x32x512xf32, #tpu.memory_space<vmem>>, vector<1x32x512xf32>
    %4 = vector.shape_cast %3 : vector<1x32x512xf32> to vector<32x512xf32>
    %c0_3 = arith.constant 0 : index
    %c0_4 = arith.constant 0 : index
    %5 = vector.load %arg6[%c0_3, %c0_4] : memref<32x1xf32, #tpu.memory_space<vmem>>, vector<32x1xf32>
    %cst = arith.constant dense<0.000000e+00> : vector<32xf32>
    %6 = vector.multi_reduction <add>, %4, %cst [1] : vector<32x512xf32> to vector<32xf32>
    %7 = vector.shape_cast %6 : vector<32xf32> to vector<32x1xf32>
    %8 = arith.addf %5, %7 : vector<32x1xf32>
    %c0_5 = arith.constant 0 : index
    %c0_6 = arith.constant 0 : index
    %9 = vector.load %arg6[%c0_5, %c0_6] : memref<32x1xf32, #tpu.memory_space<vmem>>, vector<32x1xf32>
    tpu.vector_store %arg6[%c0_5, %c0_6], %8 {strides = array<i32>} : memref<32x1xf32, #tpu.memory_space<vmem>>, vector<32x1xf32>,
    %c0_7 = arith.constant 0 : index
    %c0_8 = arith.constant 0 : index
    %10 = vector.load %arg7[%c0_7, %c0_8] : memref<32x1xf32, #tpu.memory_space<vmem>>, vector<32x1xf32>
    %cst_9 = arith.constant dense<0xFF800000> : vector<32xf32>
    %11 = vector.multi_reduction <maximumf>, %4, %cst_9 [1] : vector<32x512xf32> to vector<32xf32>
    %12 = vector.shape_cast %11 : vector<32xf32> to vector<32x1xf32>
    %13 = arith.maximumf %10, %12 : vector<32x1xf32>
    %c0_10 = arith.constant 0 : index
    %c0_11 = arith.constant 0 : index
    %14 = vector.load %arg7[%c0_10, %c0_11] : memref<32x1xf32, #tpu.memory_space<vmem>>, vector<32x1xf32>
    tpu.vector_store %arg7[%c0_10, %c0_11], %13 {strides = array<i32>} : memref<32x1xf32, #tpu.memory_space<vmem>>, vector<32x1xf32>,
    %c0_i32_12 = arith.constant 0 : i32
    %15 = arith.cmpi eq, %arg2, %c0_i32_12 : i32
    %16 = arith.extui %15 : i1 to i32
    %c0_i32_13 = arith.constant 0 : i32
    %17 = arith.cmpi ne, %16, %c0_i32_13 : i32
    scf.if %17 {
      %c0_14 = arith.constant 0 : index
      %c0_15 = arith.constant 0 : index
      %18 = vector.load %arg6[%c0_14, %c0_15] : memref<32x1xf32, #tpu.memory_space<vmem>>, vector<32x1xf32>
      %c0_16 = arith.constant 0 : index
      %c0_17 = arith.constant 0 : index
      %c0_18 = arith.constant 0 : index
      %c0_19 = arith.constant 0 : index
      %19 = vector.load %arg4[%c0_16, %c0_17, %c0_18, %c0_19] : memref<1x1x32x1xf32, #tpu.memory_space<vmem>>, vector<1x1x32x1xf32>
      %20 = vector.shape_cast %19 : vector<1x1x32x1xf32> to vector<32x1xf32>
      %21 = vector.shape_cast %18 : vector<32x1xf32> to vector<1x1x32x1xf32>
      tpu.vector_store %arg4[%c0_16, %c0_17, %c0_18, %c0_19], %21 {strides = array<i32>} : memref<1x1x32x1xf32, #tpu.memory_space<vmem>>, vector<1x1x32x1xf32>,
      %c0_20 = arith.constant 0 : index
      %c0_21 = arith.constant 0 : index
      %22 = vector.load %arg7[%c0_20, %c0_21] : memref<32x1xf32, #tpu.memory_space<vmem>>, vector<32x1xf32>
      %c0_22 = arith.constant 0 : index
      %c0_23 = arith.constant 0 : index
      %c0_24 = arith.constant 0 : index
      %c0_25 = arith.constant 0 : index
      %23 = vector.load %arg5[%c0_22, %c0_23, %c0_24, %c0_25] : memref<1x1x32x1xf32, #tpu.memory_space<vmem>>, vector<1x1x32x1xf32>
      %24 = vector.shape_cast %23 : vector<1x1x32x1xf32> to vector<32x1xf32>
      %25 = vector.shape_cast %22 : vector<32x1xf32> to vector<1x1x32x1xf32>
      tpu.vector_store %arg5[%c0_22, %c0_23, %c0_24, %c0_25], %25 {strides = array<i32>} : memref<1x1x32x1xf32, #tpu.memory_space<vmem>>, vector<1x1x32x1xf32>,
    } else {
    }
    return
  }
  func.func @transform_0(%arg0: i32, %arg1: i32, %arg2: i32) -> (i32, i32, i32) {
    %c1_i32 = arith.constant 1 : i32
    %0 = arith.muli %arg1, %c1_i32 : i32
    %1 = arith.addi %0, %arg2 : i32
    %c0_i32 = arith.constant 0 : i32
    %c0_i32_0 = arith.constant 0 : i32
    return %arg0, %c0_i32, %1 : i32, i32, i32
  }
  func.func @transform_1(%arg0: i32, %arg1: i32, %arg2: i32) -> (i32, i32, i32, i32) {
    %c0_i32 = arith.constant 0 : i32
    %c0_i32_0 = arith.constant 0 : i32
    %c0_i32_1 = arith.constant 0 : i32
    return %arg0, %arg1, %c0_i32, %c0_i32_0 : i32, i32, i32, i32
  }
  func.func @transform_2(%arg0: i32, %arg1: i32, %arg2: i32) -> (i32, i32, i32, i32) {
    %c0_i32 = arith.constant 0 : i32
    %c0_i32_0 = arith.constant 0 : i32
    %c0_i32_1 = arith.constant 0 : i32
    return %arg0, %arg1, %c0_i32, %c0_i32_0 : i32, i32, i32, i32
  }
}

</mosaic_0001>

<llo_original>
// kernel: tpu_custom_call.1
$region0: #{tpu_custom_call.1}
  #allocation0 [shape = 'u32[]', space=smem, size = 0x4, offset = 0x4, fixed_abs, tag = 'smem constant byte address 0x4 - core index']
  #allocation1 [shape = 'u32[144,128]{1,0:T(1,128)}', space=vmem, size = 0x12000, scoped, tag = 'internal scratch']
  #allocation2 [shape = 'f32[32,1]{1,0:T(8,128)}', space=vmem, size = 0x4000, scoped, tag = 'scratch operand']
  #allocation3 [shape = 'f32[32,1]{1,0:T(8,128)}', space=vmem, size = 0x4000, scoped, tag = 'scratch operand']
  %s0 = inlined_call_operand.hbm [shape: f32[2,32,512], index: 0, kind: input, shape index: {}]
  %s1 = inlined_call_operand.vmem [shape: f32[2,1,32,1], index: 1, kind: output, shape index: {0}]
  %s2 = inlined_call_operand.vmem [shape: f32[2,1,32,1], index: 2, kind: output, shape index: {1}]
  %3 = xla_tuple %s1, %s2
  %s4 = sld [smem:[#allocation0]]
  $region57: #{tpu_custom_call.1} parent=0
    _
  %s6 = ssub.s32 1, %s4
  %s7 = scalar_select 0, %s6, %s4
  $region1: #{tpu_custom_call.1} parent=0
    #allocation4 [shape = 'u8[131072]{0}', space=vmem, size = 0x20000, scoped, tag = 'input window, operand 0']
    #allocation5 [shape = 's32[2]{0}', space=sflag, size = 0x8, scoped, tag = 'scoped memory for tpu_custom_call.1']
    %8 = vsyncpa [#allocation5], 0
    %s9 = scalar_lea.sflag [#allocation5], 1
    %10 = vsyncpa %s9, 0
    loop: start=0, step=1, limit=4
    $region2: #{tpu_custom_call.1} parent=1 // loop_pre_header
      _
    $region3: #{tpu_custom_call.1} parent=1 // loop_header
      %s12 = sphi 0, %s16
      %p13 = scmp.ge.s32.totalorder %s12, 4
      %s19 = sphi 0, %s38
      %s20 = sphi 0, %s34
      %s21 = sphi 0, %s30
      %s22 = sphi 0, %s19
      %s23 = sphi 0, %s20
      %s24 = sphi 0, %s21
      %s25 = sphi 0, %s22
      %s26 = sphi 0, %s23
      %s27 = sphi 0, %s24
      %s45 = sphi 0, %s47
      %s48 = sphi 0, %s45
      %s49 = sphi 0, %s48
      %s65 = sphi 0, %s49
      %s73 = sphi 0, %s75
      %s76 = sphi 0, %s73
      %s77 = sphi 0, %s76
      %s93 = sphi 0, %s77
      %s101 = sphi 0, %s103
      %s104 = sphi 0, %s101
      %s105 = sphi 0, %s104
      %s121 = sphi 0, %s105
    $region4: #{tpu_custom_call.1} parent=1 // loop_header_branch
      %15 = sbr.rel (%p13) target = $region8
    $region5: #{tpu_custom_call.1} parent=1 // loop_body
      %s17 = ssub.s32 %s12, 1
      %s18 = ssub.s32 %s12, 2
      %s28 = sadd.s32 1, %s21
      %p29 = scmp.ge.s32.totalorder %s28, 1
      %s30 = scalar_select %p29, 0, %s28
      %s31 = sadd.s32 1, %s20
      %s32 = scalar_select %p29, %s31, %s20
      %p33 = scmp.ge.s32.totalorder %s32, 1
      %s34 = scalar_select %p33, 0, %s32
      %s35 = sadd.s32 1, %s19
      %s36 = scalar_select %p33, %s35, %s19
      %p37 = scmp.ge.s32.totalorder %s36, 2
      %s38 = scalar_select %p37, 0, %s36
      %s39 = sadd.s32 %s20, %s21
      %s40 = sadd.s32 %s34, %s30
      %s41 = ssub.s32 %s19, %s38
      %s42 = ssub.s32 %s39, %s40
      %s43 = sor.u32 %s41, %s42
      %p44 = scmp.eq.s32.totalorder %s43, 0
      %s46 = sadd.s32 %s45, 1
      %s47 = scalar_select %p44, %s45, %s46
      %p50 = pneg %p44
      %p51 = scmp.eq.s32.totalorder %s12, 1
      %p52 = por %p50, %p51
      %p53 = scmp.ne.s32.totalorder %s45, %s48
      %p54 = scmp.eq.s32.totalorder %s12, 0
      %p55 = por %p53, %p54
      %p56 = scmp.ne.s32.totalorder %s45, %s48
      %p57 = scmp.eq.s32.totalorder %s17, 1
      %p58 = por %p56, %p57
      %p59 = scmp.ne.s32.totalorder %s48, %s49
      %p60 = scmp.eq.s32.totalorder %s17, 0
      %p61 = por %p59, %p60
      %p62 = scmp.ne.s32.totalorder %s48, %s49
      %p63 = scmp.eq.s32.totalorder %s18, 1
      %p64 = por %p62, %p63
      %p66 = scmp.ne.s32.totalorder %s49, %s65
      %p67 = scmp.eq.s32.totalorder %s18, 0
      %p68 = por %p66, %p67
      %s69 = ssub.s32 %s19, %s38
      %s70 = ssub.s32 %s20, %s34
      %s71 = sor.u32 %s69, %s70
      %p72 = scmp.eq.s32.totalorder %s71, 0
      %s74 = sadd.s32 %s73, 1
      %s75 = scalar_select %p72, %s73, %s74
      %p78 = pneg %p72
      %p79 = scmp.eq.s32.totalorder %s12, 1
      %p80 = por %p78, %p79
      %p81 = scmp.ne.s32.totalorder %s73, %s76
      %p82 = scmp.eq.s32.totalorder %s12, 0
      %p83 = por %p81, %p82
      %p84 = scmp.ne.s32.totalorder %s73, %s76
      %p85 = scmp.eq.s32.totalorder %s17, 1
      %p86 = por %p84, %p85
      %p87 = scmp.ne.s32.totalorder %s76, %s77
      %p88 = scmp.eq.s32.totalorder %s17, 0
      %p89 = por %p87, %p88
      %p90 = scmp.ne.s32.totalorder %s76, %s77
      %p91 = scmp.eq.s32.totalorder %s18, 1
      %p92 = por %p90, %p91
      %p94 = scmp.ne.s32.totalorder %s77, %s93
      %p95 = scmp.eq.s32.totalorder %s18, 0
      %p96 = por %p94, %p95
      %s97 = ssub.s32 %s19, %s38
      %s98 = ssub.s32 %s20, %s34
      %s99 = sor.u32 %s97, %s98
      %p100 = scmp.eq.s32.totalorder %s99, 0
      %s102 = sadd.s32 %s101, 1
      %s103 = scalar_select %p100, %s101, %s102
      %p106 = pneg %p100
      %p107 = scmp.eq.s32.totalorder %s12, 1
      %p108 = por %p106, %p107
      %p109 = scmp.ne.s32.totalorder %s101, %s104
      %p110 = scmp.eq.s32.totalorder %s12, 0
      %p111 = por %p109, %p110
      %p112 = scmp.ne.s32.totalorder %s101, %s104
      %p113 = scmp.eq.s32.totalorder %s17, 1
      %p114 = por %p112, %p113
      %p115 = scmp.ne.s32.totalorder %s104, %s105
      %p116 = scmp.eq.s32.totalorder %s17, 0
      %p117 = por %p115, %p116
      %p118 = scmp.ne.s32.totalorder %s104, %s105
      %p119 = scmp.eq.s32.totalorder %s18, 1
      %p120 = por %p118, %p119
      %p122 = scmp.ne.s32.totalorder %s105, %s121
      %p123 = scmp.eq.s32.totalorder %s18, 0
      %p124 = por %p122, %p123
      %p125 = scmp.le.s32.totalorder 1, %s12
      %p126 = scmp.lt.s32.totalorder %s12, 3
      %p127 = pnand %p125, %p126
      %p128 = pneg %p127
      // Predicated region
      $region9: #{tpu_custom_call.1} parent=5 // pred_check
        _
      $region10: #{tpu_custom_call.1} parent=5 // pred_check_branch
        %130 = sbr.rel (%p127) target = $region12
      $region11: #{tpu_custom_call.1} parent=5 // pred_region
        %s131 = ssub.s32 %s12, 1
      $region12: #{tpu_custom_call.1} parent=5 // pred_fallthru
        _
      %p132 = scmp.lt.s32.totalorder %s12, 2
      // Predicated region
      $region13: #{tpu_custom_call.1} parent=5 // pred_check
        %p133 = pneg %p132
      $region14: #{tpu_custom_call.1} parent=5 // pred_check_branch
        %135 = sbr.rel (%p133) target = $region16
      $region15: #{tpu_custom_call.1} parent=5 // pred_region
        // Predicated region
        $region17: #{tpu_custom_call.1} parent=15 // pred_check
          %p136 = pneg %p55
        $region18: #{tpu_custom_call.1} parent=15 // pred_check_branch
          %138 = sbr.rel (%p136) target = $region20
        $region19: #{tpu_custom_call.1} parent=15 // pred_region
          %s139 = sand.u32 %s45, 1
          %s140 = scalar_lea.sflag [#allocation5], %s139
          %s141 = sand.u32 %s45, 1
          %s142 = smul.addr %s141, 128
          %s143 = scalar_lea.vmem [#allocation4], %s142
          %s144 = sadd.s32 %s20, %s21
          %s145 = smul.u32 4, %s144
          %s147 = ssub.s32 2048, 2048
          %148 = vsyncadd %s140, %s147
          %s149 = smul.addr %s19, 16
          %s150 = sadd.s32 %s145, %s149
          %s151 = smul.addr %s150, 128
          %s152 = scalar_lea.hbm %s0, %s151
          %s153 = sshll.u32 %s143, 4
          %s154 = int_to_ptr.vmem [resolvable:$true] %s153
          %159 = dma.hbm_to_vmem [thread:$0]  %s152, 2048, %s154, %s140, 512, 512, 32
        $region20: #{tpu_custom_call.1} parent=15 // pred_fallthru
          _
      $region16: #{tpu_custom_call.1} parent=5 // pred_fallthru
        _
      %p160 = scmp.le.s32.totalorder 1, %s12
      %p161 = scmp.lt.s32.totalorder %s12, 3
      %p162 = pnand %p160, %p161
      %p163 = pneg %p162
      // Predicated region
      $region21: #{tpu_custom_call.1} parent=5 // pred_check
        _
      $region22: #{tpu_custom_call.1} parent=5 // pred_check_branch
        %165 = sbr.rel (%p162) target = $region24
      $region23: #{tpu_custom_call.1} parent=5 // pred_region
        %s166 = ssub.s32 %s12, 1
        %s167 = sand.u32 %s48, 1
        %s168 = scalar_lea.sflag [#allocation5], %s167
        %s169 = sand.u32 %s48, 1
        %s170 = smul.addr %s169, 128
        %s171 = scalar_lea.vmem [#allocation4], %s170
        // Predicated region
        $region25: #{tpu_custom_call.1} parent=23 // pred_check
          %p172 = pneg %p61
        $region26: #{tpu_custom_call.1} parent=23 // pred_check_branch
          %174 = sbr.rel (%p172) target = $region28
        $region27: #{tpu_custom_call.1} parent=23 // pred_region
          %175 = dma.done %s168, 2048
        $region28: #{tpu_custom_call.1} parent=23 // pred_fallthru
          _
        %s176 = sand.u32 %s48, 1
        %s177 = scalar_lea.sflag [#allocation5], %s176
        %s178 = sand.u32 %s48, 1
        %s179 = smul.addr %s178, 128
        %s180 = scalar_lea.vmem [#allocation4], %s179
        %p181 = pneg %p61
        %p182 = pneg %p58
        %p183 = pneg %p89
        %p184 = pneg %p86
        %p185 = scmp.lt.s32.totalorder %s22, 1
        %s186 = scalar_select %p185, %s22, 1
        %p187 = scmp.lt.s32.totalorder %s23, 0
        %s188 = scalar_select %p187, %s23, 0
        %s189 = smul.addr %s188, 4
        %s190 = smul.addr %s186, 4
        %s191 = sadd.s32 %s189, %s190
        %s192 = smul.addr %s191, 8
        %s193 = scalar_lea.vmem %s1, %s192
        %p194 = pneg %p117
        %p195 = pneg %p114
        %p196 = scmp.lt.s32.totalorder %s22, 1
        %s197 = scalar_select %p196, %s22, 1
        %p198 = scmp.lt.s32.totalorder %s23, 0
        %s199 = scalar_select %p198, %s23, 0
        %s200 = smul.addr %s199, 4
        %s201 = smul.addr %s197, 4
        %s202 = sadd.s32 %s200, %s201
        %s203 = smul.addr %s202, 8
        %s204 = scalar_lea.vmem %s2, %s203
        %s205 = sadd.s32 %s23, %s24
        %s206 = smul.u32 4, %s205
        %p207 = scmp.lt.s32.totalorder %s22, 1
        %s208 = scalar_select %p207, %s22, 1
        %p209 = scmp.lt.s32.totalorder %s23, 0
        %s210 = scalar_select %p209, %s23, 0
        %s211 = smul.addr %s210, 4
        %s212 = smul.addr %s208, 4
        %s213 = sadd.s32 %s211, %s212
        %s214 = smul.addr %s213, 8
        %s215 = scalar_lea.vmem %s1, %s214
        %p216 = scmp.lt.s32.totalorder %s22, 1
        %s217 = scalar_select %p216, %s22, 1
        %p218 = scmp.lt.s32.totalorder %s23, 0
        %s219 = scalar_select %p218, %s23, 0
        %s220 = smul.addr %s219, 4
        %s221 = smul.addr %s217, 4
        %s222 = sadd.s32 %s220, %s221
        %s223 = smul.addr %s222, 8
        %s224 = scalar_lea.vmem %s2, %s223
        %p225 = scmp.eq.s32.totalorder %s24, 0
        // Predicated region
        $region29: #{tpu_custom_call.1} parent=23 // pred_check
          %p226 = pneg %p225
        $region30: #{tpu_custom_call.1} parent=23 // pred_check_branch
          %228 = sbr.rel (%p226) target = $region32
        $region31: #{tpu_custom_call.1} parent=23 // pred_region
          %vm229 = vcmask 7168
          %230 = vst.msk [vmem:[#allocation2] sm:$0xff] %vm229, 0.0
          %231 = vst.msk [vmem:[#allocation2 + $0x8] sm:$0xff] %vm229, 0.0
          %232 = vst.msk [vmem:[#allocation2 + $0x10] sm:$0xff] %vm229, 0.0
          %233 = vst.msk [vmem:[#allocation2 + $0x18] sm:$0xff] %vm229, 0.0
          %234 = vst.msk [vmem:[#allocation3] sm:$0xff] %vm229, -inf
          %235 = vst.msk [vmem:[#allocation3 + $0x8] sm:$0xff] %vm229, -inf
          %236 = vst.msk [vmem:[#allocation3 + $0x10] sm:$0xff] %vm229, -inf
          %237 = vst.msk [vmem:[#allocation3 + $0x18] sm:$0xff] %vm229, -inf
        $region32: #{tpu_custom_call.1} parent=23 // pred_fallthru
          _
        %v238 = vld [vmem:[%s171] sm:$0xff]
        %v239 = vld [vmem:[%s171 + $0x8] sm:$0xff]
        %v240 = vld [vmem:[%s171 + $0x10] sm:$0xff]
        %v241 = vld [vmem:[%s171 + $0x18] sm:$0xff]
        %v242 = vld [vmem:[%s171 + $0x20] sm:$0xff]
        %v243 = vld [vmem:[%s171 + $0x28] sm:$0xff]
        %v244 = vld [vmem:[%s171 + $0x30] sm:$0xff]
        %v245 = vld [vmem:[%s171 + $0x38] sm:$0xff]
        %v246 = vld [vmem:[%s171 + $0x40] sm:$0xff]
        %v247 = vld [vmem:[%s171 + $0x48] sm:$0xff]
        %v248 = vld [vmem:[%s171 + $0x50] sm:$0xff]
        %v249 = vld [vmem:[%s171 + $0x58] sm:$0xff]
        %v250 = vld [vmem:[%s171 + $0x60] sm:$0xff]
        %v251 = vld [vmem:[%s171 + $0x68] sm:$0xff]
        %v252 = vld [vmem:[%s171 + $0x70] sm:$0xff]
        %v253 = vld [vmem:[%s171 + $0x78] sm:$0xff]
        %v254 = vld [vmem:[#allocation2] sm:$0xff]
        %v255 = vld [vmem:[#allocation2 + $0x8] sm:$0xff]
        %v256 = vld [vmem:[#allocation2 + $0x10] sm:$0xff]
        %v257 = vld [vmem:[#allocation2 + $0x18] sm:$0xff]
        %v258 = vadd.f32 %v238, %v239
        %v259 = vadd.f32 %v258, %v240
        %v260 = vadd.f32 %v259, %v241
        %261 = vadd.xlane.f32.xlu0 %v260
        %v262 = vpop.xlane.xlu0 %261
        %v263 = vadd.f32 %v242, %v243
        %v264 = vadd.f32 %v263, %v244
        %v265 = vadd.f32 %v264, %v245
        %266 = vadd.xlane.f32.xlu0 %v265
        %v267 = vpop.xlane.xlu0 %266
        %v268 = vadd.f32 %v246, %v247
        %v269 = vadd.f32 %v268, %v248
        %v270 = vadd.f32 %v269, %v249
        %271 = vadd.xlane.f32.xlu0 %v270
        %v272 = vpop.xlane.xlu0 %271
        %v273 = vadd.f32 %v250, %v251
        %v274 = vadd.f32 %v273, %v252
        %v275 = vadd.f32 %v274, %v253
        %276 = vadd.xlane.f32.xlu0 %v275
        %v277 = vpop.xlane.xlu0 %276
        %v278 = vadd.f32 %v254, %v262
        %v279 = vadd.f32 %v255, %v267
        %v280 = vadd.f32 %v256, %v272
        %v281 = vadd.f32 %v257, %v277
        %vm282 = vcmask 7168
        %283 = vst.msk [vmem:[#allocation2] sm:$0xff] %vm282, %v278
        %284 = vst.msk [vmem:[#allocation2 + $0x8] sm:$0xff] %vm282, %v279
        %285 = vst.msk [vmem:[#allocation2 + $0x10] sm:$0xff] %vm282, %v280
        %286 = vst.msk [vmem:[#allocation2 + $0x18] sm:$0xff] %vm282, %v281
        %v287 = vld [vmem:[#allocation3] sm:$0xff]
        %v288 = vld [vmem:[#allocation3 + $0x8] sm:$0xff]
        %v289 = vld [vmem:[#allocation3 + $0x10] sm:$0xff]
        %v290 = vld [vmem:[#allocation3 + $0x18] sm:$0xff]
        %v291 = vmax.f32 %v238, %v239
        %v292 = vmax.f32 %v291, %v240
        %v293 = vmax.f32 %v292, %v241
        %294 = vmax.xlane.f32.xlu0 %v293
        %v295 = vpop.xlane.xlu0 %294
        %v296 = vmax.f32 %v242, %v243
        %v297 = vmax.f32 %v296, %v244
        %v298 = vmax.f32 %v297, %v245
        %299 = vmax.xlane.f32.xlu0 %v298
        %v300 = vpop.xlane.xlu0 %299
        %v301 = vmax.f32 %v246, %v247
        %v302 = vmax.f32 %v301, %v248
        %v303 = vmax.f32 %v302, %v249
        %304 = vmax.xlane.f32.xlu0 %v303
        %v305 = vpop.xlane.xlu0 %304
        %v306 = vmax.f32 %v250, %v251
        %v307 = vmax.f32 %v306, %v252
        %v308 = vmax.f32 %v307, %v253
        %309 = vmax.xlane.f32.xlu0 %v308
        %v310 = vpop.xlane.xlu0 %309
        %v311 = vmax.f32 %v287, %v295
        %v312 = vmax.f32 %v288, %v300
        %v313 = vmax.f32 %v289, %v305
        %v314 = vmax.f32 %v290, %v310
        %315 = vst.msk [vmem:[#allocation3] sm:$0xff] %vm282, %v311
        %316 = vst.msk [vmem:[#allocation3 + $0x8] sm:$0xff] %vm282, %v312
        %317 = vst.msk [vmem:[#allocation3 + $0x10] sm:$0xff] %vm282, %v313
        %318 = vst.msk [vmem:[#allocation3 + $0x18] sm:$0xff] %vm282, %v314
        // Predicated region
        $region33: #{tpu_custom_call.1} parent=23 // pred_check
          %p319 = pneg %p225
        $region34: #{tpu_custom_call.1} parent=23 // pred_check_branch
          %321 = sbr.rel (%p319) target = $region36
        $region35: #{tpu_custom_call.1} parent=23 // pred_region
          %v322 = vld [vmem:[#allocation2] sm:$0xff]
          %v323 = vld [vmem:[#allocation2 + $0x8] sm:$0xff]
          %v324 = vld [vmem:[#allocation2 + $0x10] sm:$0xff]
          %v325 = vld [vmem:[#allocation2 + $0x18] sm:$0xff]
          %326 = vst.msk [vmem:[%s215] sm:$0xff] %vm282, %v322
          %327 = vst.msk [vmem:[%s215 + $0x8] sm:$0xff] %vm282, %v323
          %328 = vst.msk [vmem:[%s215 + $0x10] sm:$0xff] %vm282, %v324
          %329 = vst.msk [vmem:[%s215 + $0x18] sm:$0xff] %vm282, %v325
          %v330 = vld [vmem:[#allocation3] sm:$0xff]
          %v331 = vld [vmem:[#allocation3 + $0x8] sm:$0xff]
          %v332 = vld [vmem:[#allocation3 + $0x10] sm:$0xff]
          %v333 = vld [vmem:[#allocation3 + $0x18] sm:$0xff]
          %334 = vst.msk [vmem:[%s224] sm:$0xff] %vm282, %v330
          %335 = vst.msk [vmem:[%s224 + $0x8] sm:$0xff] %vm282, %v331
          %336 = vst.msk [vmem:[%s224 + $0x10] sm:$0xff] %vm282, %v332
          %337 = vst.msk [vmem:[%s224 + $0x18] sm:$0xff] %vm282, %v333
        $region36: #{tpu_custom_call.1} parent=23 // pred_fallthru
          _
        %p338 = scmp.lt.s32.totalorder %s22, 1
        %s339 = scalar_select %p338, %s22, 1
        %p340 = scmp.lt.s32.totalorder %s23, 0
        %s341 = scalar_select %p340, %s23, 0
        %s342 = smul.addr %s341, 4
        %s343 = smul.addr %s339, 4
        %s344 = sadd.s32 %s342, %s343
        %s345 = smul.addr %s344, 8
        %s346 = scalar_lea.vmem %s1, %s345
        %p347 = scmp.lt.s32.totalorder %s22, 1
        %s348 = scalar_select %p347, %s22, 1
        %p349 = scmp.lt.s32.totalorder %s23, 0
        %s350 = scalar_select %p349, %s23, 0
        %s351 = smul.addr %s350, 4
        %s352 = smul.addr %s348, 4
        %s353 = sadd.s32 %s351, %s352
        %s354 = smul.addr %s353, 8
        %s355 = scalar_lea.vmem %s2, %s354
        // Predicated region
        $region37: #{tpu_custom_call.1} parent=23 // pred_check
          %p356 = pneg %p86
        $region38: #{tpu_custom_call.1} parent=23 // pred_check_branch
          %358 = sbr.rel (%p356) target = $region40
        $region39: #{tpu_custom_call.1} parent=23 // pred_region
          _
        $region40: #{tpu_custom_call.1} parent=23 // pred_fallthru
          _
        // Predicated region
        $region41: #{tpu_custom_call.1} parent=23 // pred_check
          %p359 = pneg %p114
        $region42: #{tpu_custom_call.1} parent=23 // pred_check_branch
          %361 = sbr.rel (%p359) target = $region44
        $region43: #{tpu_custom_call.1} parent=23 // pred_region
          _
        $region44: #{tpu_custom_call.1} parent=23 // pred_fallthru
          _
      $region24: #{tpu_custom_call.1} parent=5 // pred_fallthru
        _
      %p362 = scmp.le.s32.totalorder 2, %s12
      // Predicated region
      $region45: #{tpu_custom_call.1} parent=5 // pred_check
        %p363 = pneg %p362
      $region46: #{tpu_custom_call.1} parent=5 // pred_check_branch
        %365 = sbr.rel (%p363) target = $region48
      $region47: #{tpu_custom_call.1} parent=5 // pred_region
        %s366 = ssub.s32 %s12, 2
        // Predicated region
        $region49: #{tpu_custom_call.1} parent=47 // pred_check
          %p367 = pneg %p92
        $region50: #{tpu_custom_call.1} parent=47 // pred_check_branch
          %369 = sbr.rel (%p367) target = $region52
        $region51: #{tpu_custom_call.1} parent=47 // pred_region
          %p370 = scmp.lt.s32.totalorder %s25, 1
          %s371 = scalar_select %p370, %s25, 1
          %p372 = scmp.lt.s32.totalorder %s26, 0
          %s373 = scalar_select %p372, %s26, 0
          %s374 = smul.addr %s373, 4
          %s375 = smul.addr %s371, 4
          %s376 = sadd.s32 %s374, %s375
          %s377 = smul.addr %s376, 8
          %s378 = scalar_lea.vmem %s1, %s377
        $region52: #{tpu_custom_call.1} parent=47 // pred_fallthru
          _
        // Predicated region
        $region53: #{tpu_custom_call.1} parent=47 // pred_check
          %p379 = pneg %p120
        $region54: #{tpu_custom_call.1} parent=47 // pred_check_branch
          %381 = sbr.rel (%p379) target = $region56
        $region55: #{tpu_custom_call.1} parent=47 // pred_region
          %p382 = scmp.lt.s32.totalorder %s25, 1
          %s383 = scalar_select %p382, %s25, 1
          %p384 = scmp.lt.s32.totalorder %s26, 0
          %s385 = scalar_select %p384, %s26, 0
          %s386 = smul.addr %s385, 4
          %s387 = smul.addr %s383, 4
          %s388 = sadd.s32 %s386, %s387
          %s389 = smul.addr %s388, 8
          %s390 = scalar_lea.vmem %s2, %s389
        $region56: #{tpu_custom_call.1} parent=47 // pred_fallthru
          _
      $region48: #{tpu_custom_call.1} parent=5 // pred_fallthru
        _
    $region6: #{tpu_custom_call.1} parent=1 // loop_footer
      %s16 = sadd.s32 1, %s12
    $region7: #{tpu_custom_call.1} parent=1 // loop_footer_branch
      %11 = sbr.rel target = $region3
    $region8: #{tpu_custom_call.1} parent=1 // loop_exit
      _
    %391 = vsyncpa [#allocation5], 1
    %s392 = scalar_lea.sflag [#allocation5], 1
    %393 = vsyncpa %s392, 1

</llo_original>
